<compile_context>
chip_gen: v7x
topology: tpu7x:2x2x1
jax: 0.10.0
libtpu: 0.0.40
codegen_flags: <defaults>
</compile_context>

<pallas_src>
import functools

import jax
import jax.numpy as jnp
from jax.experimental import pallas as pl
from jax.experimental.pallas import tpu as pltpu

TRIM_H = 201  # matches x[:, :, :201, :]

_LANE = 128


def _round_up(v: int, m: int) -> int:
    return (v + m - 1) // m * m


def _sublane(itemsize: int) -> int:
    # Sublane packing depth per 32-bit row: f32 -> 8, bf16 -> 16, int8/fp8 -> 32.
    return {4: 8, 2: 16, 1: 32}.get(itemsize, 8)


def _trim_kernel(x_ref, o_ref, *, out_cols: int):
    # x_ref: (r_blk, H*W) VMEM tile; o_ref: (r_blk, h_out*W) VMEM tile.
    # Static prefix copy along the flattened lane axis; the pipelined HBM<->VMEM
    # DMAs around this are the real cost of the op.
    o_ref[...] = x_ref[:, :out_cols]


def trim(x: jax.Array, *, block_vmem_budget: int = 4 * 1024 * 1024) -> jax.Array:
    """Pallas equivalent of Trim.forward: x[:, :, :201, :] for NCHW x."""
    n, c, h_in, w = x.shape
    h_out = min(TRIM_H, h_in)  # PyTorch slicing clamps when H <= 201.

    if h_out == h_in:
        # Identity slice: no work, no HBM round trip.
        return x

    rows = n * c
    in_cols = h_in * w
    out_cols = h_out * w

    # Contiguous row-major dim collapse -> free reshape (no relayout copy).
    x2 = x.reshape(rows, in_cols)

    itemsize = jnp.dtype(x.dtype).itemsize
    sublane = _sublane(itemsize)

    # Per-row VMEM cost (in + out) after lane padding to 128.
    per_row = (_round_up(in_cols, _LANE) + _round_up(out_cols, _LANE)) * itemsize

    if rows <= sublane:
        # Tiny problem: one full-extent block (always a legal block shape).
        r_blk = rows
    else:
        budget_rows = max(1, block_vmem_budget // max(per_row, 1))
        # Multiple of the sublane depth so the second-minor block dim is legal.
        r_blk = max(sublane, (budget_rows // sublane) * sublane)
        if rows >= 2 * sublane:
            # v7x: guarantee >= 2 grid blocks so both TensorCores get work and the
            # pipeline has something to overlap (near-zero effect on v5e/v6e).
            half = _round_up(pl.cdiv(rows, 2), sublane)
            r_blk = min(r_blk, half)
        if r_blk >= rows:
            r_blk = rows  # full extent: legal even if not a sublane multiple.

    grid = (pl.cdiv(rows, r_blk),)  # ragged last block is fine (masked writes)

    in_spec = pl.BlockSpec((r_blk, in_cols), lambda i: (i, 0))
    out_spec = pl.BlockSpec((r_blk, out_cols), lambda i: (i, 0))

    y2 = pl.pallas_call(
        functools.partial(_trim_kernel, out_cols=out_cols),
        out_shape=jax.ShapeDtypeStruct((rows, out_cols), x.dtype),
        grid=grid,
        in_specs=[in_spec],
        out_specs=out_spec,
        compiler_params=pltpu.CompilerParams(
            # Independent row blocks -> megacore can split the copy on v7x.
            dimension_semantics=("parallel",),
            # Double-buffered in+out blocks stay ~2x the 4 MiB budget; keep the
            # explicit limit well under v7x's 64 MiB physical / 32 MiB scoped VMEM.
            vmem_limit_bytes=32 * 1024 * 1024,
        ),
    )(x2)

    # Free reshape back to NCHW.
    return y2.reshape(n, c, h_out, w)


if __name__ == "__main__":
    key = jax.random.PRNGKey(0)
    # Small shapes consistent with the module: H > 201 so the trim is meaningful,
    # plus H < 201 (identity early-exit), a ragged multi-block case, and bf16.
    cases = [
        ((2, 4, 208, 16), jnp.float32),    # main case: trims 208 -> 201 rows
        ((1, 3, 224, 24), jnp.float32),    # odd channel count / wider W, rows < sublane
        ((2, 2, 64, 16), jnp.float32),     # H < 201: identity early-exit path
        ((1, 20, 208, 16), jnp.float32),   # multi-block grid with ragged last block
        ((2, 4, 208, 16), jnp.bfloat16),   # dtype-aware sublane path
    ]
    for idx, (shape, dtype) in enumerate(cases):
        x = jax.random.normal(jax.random.fold_in(key, idx), shape, dtype=jnp.float32)
        x = x.astype(dtype)
        y = jax.block_until_ready(trim(x))
        ref = x[:, :, :TRIM_H, :]
        assert y.shape == ref.shape, (y.shape, ref.shape)
        assert y.dtype == x.dtype
        assert bool(jnp.array_equal(y, ref)), f"mismatch for shape {shape} {dtype}"
    print("KERNEL_OK")
</pallas_src>

<mosaic_0001>
module attributes {stable_mosaic.version = 11 : i64} {
  func.func @_trim_kernel(%arg0: i32, %arg1: memref<8x3328xf32, #tpu.memory_space<vmem>>, %arg2: memref<8x3216xf32, #tpu.memory_space<vmem>>) attributes {dimension_semantics = [#tpu.dimension_semantics<parallel>], iteration_bounds = array<i64: 1>, scalar_prefetch = 0 : i64, scratch_operands = 0 : i64, tpu.core_type = #tpu.core_type<tc>, window_params = [{transform_indices = @transform_0, window_bounds = array<i64: 8, 3328>}, {transform_indices = @transform_1, window_bounds = array<i64: 8, 3216>}]} {
    %c0 = arith.constant 0 : index
    %c0_0 = arith.constant 0 : index
    %0 = vector.load %arg1[%c0, %c0_0] : memref<8x3328xf32, #tpu.memory_space<vmem>>, vector<8x3216xf32>
    %c0_1 = arith.constant 0 : index
    %c0_2 = arith.constant 0 : index
    %1 = vector.load %arg2[%c0_1, %c0_2] : memref<8x3216xf32, #tpu.memory_space<vmem>>, vector<8x3216xf32>
    tpu.vector_store %arg2[%c0_1, %c0_2], %0 {strides = array<i32>} : memref<8x3216xf32, #tpu.memory_space<vmem>>, vector<8x3216xf32>,
    return
  }
  func.func @transform_0(%arg0: i32) -> (i32, i32) {
    %c0_i32 = arith.constant 0 : i32
    %c0_i32_0 = arith.constant 0 : i32
    return %arg0, %c0_i32 : i32, i32
  }
  func.func @transform_1(%arg0: i32) -> (i32, i32) {
    %c0_i32 = arith.constant 0 : i32
    %c0_i32_0 = arith.constant 0 : i32
    return %arg0, %c0_i32 : i32, i32
  }
}

</mosaic_0001>

<llo_original>
// kernel: tpu_custom_call.1
$region0: #{tpu_custom_call.1}
  #allocation0 [shape = 'u32[]', space=smem, size = 0x4, offset = 0x4, fixed_abs, tag = 'smem constant byte address 0x4 - core index']
  #allocation1 [shape = 'u32[144,128]{1,0:T(1,128)}', space=vmem, size = 0x12000, scoped, tag = 'internal scratch']
  %s0 = inlined_call_operand.hbm [shape: f32[8,3328], index: 0, kind: input, shape index: {}]
  %s1 = inlined_call_operand.hbm [shape: f32[8,3216], index: 1, kind: output, shape index: {}]
  %s2 = sld [smem:[#allocation0]]
  $region18: #{tpu_custom_call.1} parent=0
    _
  %s4 = ssub.s32 1, %s2
  %s5 = scalar_select 0, %s4, %s2
  $region1: #{tpu_custom_call.1} parent=0
    #allocation2 [shape = 'u8[106496]{0}', space=vmem, size = 0x1a000, scoped, tag = 'input window, operand 0, single buffered']
    #allocation3 [shape = 's32[1]{0}', space=sflag, size = 0x4, scoped, tag = 'scoped memory for tpu_custom_call.1']
    #allocation4 [shape = 's32[1]{0}', space=sflag, size = 0x4, scoped, tag = 'scoped memory for tpu_custom_call.1']
    #allocation5 [shape = 'u8[106496]{0}', space=vmem, size = 0x1a000, scoped, tag = 'output window, operand 0, single buffered']
    %6 = vsyncpa [#allocation3], 0
    %7 = vsyncpa [#allocation4], 0
    // Predicated region
    $region2: #{tpu_custom_call.1} parent=1 // pred_check
      _
    $region3: #{tpu_custom_call.1} parent=1 // pred_check_branch
      %9 = sbr.rel (0) target = $region5
    $region4: #{tpu_custom_call.1} parent=1 // pred_region
      %s11 = ssub.s32 3328, 3328
      %12 = vsyncadd [#allocation3], %s11
      %s14 = sshll.u32 [#allocation2], 4
      %s15 = int_to_ptr.vmem [resolvable:$true] %s14
      %17 = dma.hbm_to_vmem [thread:$0]  %s0, 3328, %s15, [#allocation3]
    $region5: #{tpu_custom_call.1} parent=1 // pred_fallthru
      _
    // Predicated region
    $region6: #{tpu_custom_call.1} parent=1 // pred_check
      _
    $region7: #{tpu_custom_call.1} parent=1 // pred_check_branch
      %19 = sbr.rel (0) target = $region9
    $region8: #{tpu_custom_call.1} parent=1 // pred_region
      %20 = dma.done [#allocation3], 3328
    $region9: #{tpu_custom_call.1} parent=1 // pred_fallthru
      _
    %v21 = vld [vmem:[#allocation2] sm:$0xff]
    %v22 = vld [vmem:[#allocation2 + $0x8] sm:$0xff]
    %v23 = vld [vmem:[#allocation2 + $0x10] sm:$0xff]
    %v24 = vld [vmem:[#allocation2 + $0x18] sm:$0xff]
    %v25 = vld [vmem:[#allocation2 + $0x20] sm:$0xff]
    %v26 = vld [vmem:[#allocation2 + $0x28] sm:$0xff]
    %v27 = vld [vmem:[#allocation2 + $0x30] sm:$0xff]
    %v28 = vld [vmem:[#allocation2 + $0x38] sm:$0xff]
    %v29 = vld [vmem:[#allocation2 + $0x40] sm:$0xff]
    %v30 = vld [vmem:[#allocation2 + $0x48] sm:$0xff]
    %v31 = vld [vmem:[#allocation2 + $0x50] sm:$0xff]
    %v32 = vld [vmem:[#allocation2 + $0x58] sm:$0xff]
    %v33 = vld [vmem:[#allocation2 + $0x60] sm:$0xff]
    %v34 = vld [vmem:[#allocation2 + $0x68] sm:$0xff]
    %v35 = vld [vmem:[#allocation2 + $0x70] sm:$0xff]
    %v36 = vld [vmem:[#allocation2 + $0x78] sm:$0xff]
    %v37 = vld [vmem:[#allocation2 + $0x80] sm:$0xff]
    %v38 = vld [vmem:[#allocation2 + $0x88] sm:$0xff]
    %v39 = vld [vmem:[#allocation2 + $0x90] sm:$0xff]
    %v40 = vld [vmem:[#allocation2 + $0x98] sm:$0xff]
    %v41 = vld [vmem:[#allocation2 + $0xa0] sm:$0xff]
    %v42 = vld [vmem:[#allocation2 + $0xa8] sm:$0xff]
    %v43 = vld [vmem:[#allocation2 + $0xb0] sm:$0xff]
    %v44 = vld [vmem:[#allocation2 + $0xb8] sm:$0xff]
    %v45 = vld [vmem:[#allocation2 + $0xc0] sm:$0xff]
    %v46 = vld [vmem:[#allocation2 + $0xc8] sm:$0xff]
    %47 = vst [vmem:[#allocation5] sm:$0xff] %v21
    %48 = vst [vmem:[#allocation5 + $0x8] sm:$0xff] %v22
    %49 = vst [vmem:[#allocation5 + $0x10] sm:$0xff] %v23
    %50 = vst [vmem:[#allocation5 + $0x18] sm:$0xff] %v24
    %51 = vst [vmem:[#allocation5 + $0x20] sm:$0xff] %v25
    %52 = vst [vmem:[#allocation5 + $0x28] sm:$0xff] %v26
    %53 = vst [vmem:[#allocation5 + $0x30] sm:$0xff] %v27
    %54 = vst [vmem:[#allocation5 + $0x38] sm:$0xff] %v28
    %55 = vst [vmem:[#allocation5 + $0x40] sm:$0xff] %v29
    %56 = vst [vmem:[#allocation5 + $0x48] sm:$0xff] %v30
    %57 = vst [vmem:[#allocation5 + $0x50] sm:$0xff] %v31
    %58 = vst [vmem:[#allocation5 + $0x58] sm:$0xff] %v32
    %59 = vst [vmem:[#allocation5 + $0x60] sm:$0xff] %v33
    %60 = vst [vmem:[#allocation5 + $0x68] sm:$0xff] %v34
    %61 = vst [vmem:[#allocation5 + $0x70] sm:$0xff] %v35
    %62 = vst [vmem:[#allocation5 + $0x78] sm:$0xff] %v36
    %63 = vst [vmem:[#allocation5 + $0x80] sm:$0xff] %v37
    %64 = vst [vmem:[#allocation5 + $0x88] sm:$0xff] %v38
    %65 = vst [vmem:[#allocation5 + $0x90] sm:$0xff] %v39
    %66 = vst [vmem:[#allocation5 + $0x98] sm:$0xff] %v40
    %67 = vst [vmem:[#allocation5 + $0xa0] sm:$0xff] %v41
    %68 = vst [vmem:[#allocation5 + $0xa8] sm:$0xff] %v42
    %69 = vst [vmem:[#allocation5 + $0xb0] sm:$0xff] %v43
    %70 = vst [vmem:[#allocation5 + $0xb8] sm:$0xff] %v44
    %71 = vst [vmem:[#allocation5 + $0xc0] sm:$0xff] %v45
    %vm72 = vcmask 130048
    %73 = vst.msk [vmem:[#allocation5 + $0xc8] sm:$0xff] %vm72, %v46
    // Predicated region
    $region10: #{tpu_custom_call.1} parent=1 // pred_check
      _
    $region11: #{tpu_custom_call.1} parent=1 // pred_check_branch
      %75 = sbr.rel (0) target = $region13
    $region12: #{tpu_custom_call.1} parent=1 // pred_region
      %s77 = ssub.s32 3328, 3328
      %78 = vsyncadd [#allocation4], %s77
      %s80 = sshll.u32 [#allocation5], 4
      %s81 = int_to_ptr.vmem [resolvable:$true] %s80
      %83 = dma.vmem_to_hbm [thread:$0]  %s81, 3328, %s1, [#allocation4]
    $region13: #{tpu_custom_call.1} parent=1 // pred_fallthru
      _
    // Predicated region
    $region14: #{tpu_custom_call.1} parent=1 // pred_check
      _
    $region15: #{tpu_custom_call.1} parent=1 // pred_check_branch
      %85 = sbr.rel (0) target = $region17
    $region16: #{tpu_custom_call.1} parent=1 // pred_region
      %86 = dma.done [#allocation4], 3328
    $region17: #{tpu_custom_call.1} parent=1 // pred_fallthru
      _
    %87 = vsyncpa [#allocation3], 1
    %88 = vsyncpa [#allocation4], 1

</llo_original>
